<compile_context>
chip_gen: v6e
topology: v6e:2x2x1
jax: 0.10.0
libtpu: 0.0.40
codegen_flags: <defaults>
</compile_context>

<pallas_src>
import jax
import jax.numpy as jnp
from jax.experimental import pallas as pl
from jax.experimental.pallas import tpu as pltpu

_EPS = 1e-6
_TARGET_BLOCK_BYTES = 4 << 20          # ~4 MiB / input block; x2 bufs x (in+out) ~= 16 MiB VMEM
_VMEM_LIMIT_BYTES = 32 * 1024 * 1024   # within scoped/physical VMEM on v5e/v6e/v7x


def _largest_aligned_divisor(n: int, unit: int, cap: int) -> int:
    """Largest multiple of `unit` that divides `n` and is <= cap; else `n` (full dim)."""
    cap = max(unit, min(cap, n))
    best = None
    for cand in range(unit, cap + 1, unit):
        if n % cand == 0:
            best = cand
    return best if best is not None else n


# ----------------------------------------------------------------------------
# Elementwise sigmoid (applied to the relu3_3 branch output)
# ----------------------------------------------------------------------------
def _sigmoid_kernel(x_ref, o_ref):
    o_ref[...] = jax.nn.sigmoid(x_ref[...])


def sigmoid_pallas(x: jax.Array) -> jax.Array:
    orig_shape, dtype = x.shape, x.dtype
    itemsize = jnp.dtype(dtype).itemsize
    total = x.size

    # Lane-dense slab: widest multiple-of-128 lane dim (<=4096) dividing `total`
    # -> unmasked full-width stores and large DMA descriptors.
    lanes = 128
    for cand in range(4096, 127, -128):
        if total % cand == 0:
            lanes = cand
            break
    rows = -(-total // lanes)

    # Multi-MiB row blocks; block rows are a multiple of 8 unless the full dim.
    row_cap = max(8, _TARGET_BLOCK_BYTES // (lanes * itemsize))
    if rows <= row_cap:
        block_rows = rows
    else:
        block_rows = _largest_aligned_divisor(rows, 8, row_cap)
        if block_rows == rows:          # pathological row count: tile via row padding
            block_rows = (row_cap // 8) * 8
    rows_padded = -(-rows // block_rows) * block_rows
    padded_total = rows_padded * lanes

    x_flat = x.reshape(-1)
    if padded_total != total:
        # Only for sizes that don't tile cleanly; aligned sizes (the usual conv
        # feature-map case) take the copy-free fast path.
        x_flat = jnp.pad(x_flat, (0, padded_total - total))
    x2d = x_flat.reshape(rows_padded, lanes)

    grid = (rows_padded // block_rows,)
    out2d = pl.pallas_call(
        _sigmoid_kernel,
        out_shape=jax.ShapeDtypeStruct((rows_padded, lanes), dtype),
        grid=grid,
        in_specs=[pl.BlockSpec((block_rows, lanes), lambda i: (i, 0))],
        out_specs=pl.BlockSpec((block_rows, lanes), lambda i: (i, 0)),
        compiler_params=pltpu.CompilerParams(
            dimension_semantics=("parallel",),
            vmem_limit_bytes=_VMEM_LIMIT_BYTES,
        ),
        cost_estimate=pl.CostEstimate(
            flops=4 * total, transcendentals=total,
            bytes_accessed=2 * total * itemsize),
    )(x2d)

    out_flat = out2d.reshape(-1)
    if padded_total != total:
        out_flat = out_flat[:total]
    return out_flat.reshape(orig_shape)


# ----------------------------------------------------------------------------
# featureL2Norm, dim='channel':  f / sqrt(sum_c f^2 + eps)
# ----------------------------------------------------------------------------
def _channel_l2norm_kernel(x_ref, o_ref):
    # x_ref: (1, C, hw_tile); reduce over channel axis, fused rsqrt + scale.
    x = x_ref[...].astype(jnp.float32)
    inv = jax.lax.rsqrt(jnp.sum(x * x, axis=1, keepdims=True) + _EPS)
    o_ref[...] = (x * inv).astype(o_ref.dtype)


def feature_l2norm_channel(f: jax.Array) -> jax.Array:
    b, c, h, w = f.shape
    hw = h * w
    itemsize = jnp.dtype(f.dtype).itemsize
    x = f.reshape(b, c, hw)

    hw_cap = max(128, _TARGET_BLOCK_BYTES // (c * itemsize))
    hw_tile = hw if hw <= 128 else _largest_aligned_divisor(hw, 128, hw_cap)

    grid = (b, hw // hw_tile)
    out = pl.pallas_call(
        _channel_l2norm_kernel,
        out_shape=jax.ShapeDtypeStruct((b, c, hw), f.dtype),
        grid=grid,
        in_specs=[pl.BlockSpec((1, c, hw_tile), lambda i, j: (i, 0, j))],
        out_specs=pl.BlockSpec((1, c, hw_tile), lambda i, j: (i, 0, j)),
        compiler_params=pltpu.CompilerParams(
            dimension_semantics=("parallel", "parallel"),
            vmem_limit_bytes=_VMEM_LIMIT_BYTES,
        ),
        cost_estimate=pl.CostEstimate(
            flops=3 * f.size, transcendentals=b * hw,
            bytes_accessed=2 * f.size * itemsize),
    )(x)
    return out.reshape(b, c, h, w)


# ----------------------------------------------------------------------------
# featureL2Norm, dim='texture':  f / sqrt(sum_{h,w} f^2 + eps)
# ----------------------------------------------------------------------------
def _texture_l2norm_kernel(x_ref, o_ref):
    # x_ref: (1, c_tile, HW); reduce over all spatial positions per channel.
    x = x_ref[...].astype(jnp.float32)
    inv = jax.lax.rsqrt(jnp.sum(x * x, axis=-1, keepdims=True) + _EPS)
    o_ref[...] = (x * inv).astype(o_ref.dtype)


def feature_l2norm_texture(f: jax.Array) -> jax.Array:
    b, c, h, w = f.shape
    hw = h * w
    itemsize = jnp.dtype(f.dtype).itemsize
    x = f.reshape(b, c, hw)

    # Full spatial extent per block (needed for the reduction); tile channels.
    c_cap = max(8, _TARGET_BLOCK_BYTES // (hw * itemsize))
    c_tile = c if c <= c_cap else _largest_aligned_divisor(c, 8, c_cap)
    # TODO(synk): for extremely large H*W a two-pass (accumulate-then-scale)
    # grid over the spatial axis would bound VMEM; unnecessary at VGG sizes.

    grid = (b, c // c_tile)
    out = pl.pallas_call(
        _texture_l2norm_kernel,
        out_shape=jax.ShapeDtypeStruct((b, c, hw), f.dtype),
        grid=grid,
        in_specs=[pl.BlockSpec((1, c_tile, hw), lambda i, j: (i, j, 0))],
        out_specs=pl.BlockSpec((1, c_tile, hw), lambda i, j: (i, j, 0)),
        compiler_params=pltpu.CompilerParams(
            dimension_semantics=("parallel", "parallel"),
            vmem_limit_bytes=_VMEM_LIMIT_BYTES,
        ),
        cost_estimate=pl.CostEstimate(
            flops=3 * f.size, transcendentals=b * c,
            bytes_accessed=2 * f.size * itemsize),
    )(x)
    return out.reshape(b, c, h, w)


def feature_l2norm(feature: jax.Array, dim: str = "channel") -> jax.Array:
    """Pallas equivalent of featureL2Norm for NCHW feature maps."""
    if dim == "channel":
        return feature_l2norm_channel(feature)
    return feature_l2norm_texture(feature)


def feature_extraction_post(features32_pre, features8, normalization=True):
    """Pallas-expressible part of FeatureExtraction.forward (two-branch path).

    # TODO(synk): the pretrained VGG16 convolution backbones (feature32 /
    # feature8) require external torchvision weights and have no clean
    # self-contained Pallas equivalent; this applies the module's custom math
    # (sigmoid + featureL2Norm) to the backbone activations.
    """
    features32 = sigmoid_pallas(features32_pre)
    if normalization:
        f32n = feature_l2norm(features32, dim="texture")
        f8n = feature_l2norm(features8, dim="channel")
        return f32n, f8n
    return features32, features8


if __name__ == "__main__":
    key = jax.random.PRNGKey(0)
    k1, k2 = jax.random.split(key)
    # relu3_3-like (pre-sigmoid) activations and pool5-like features, small shapes.
    f32_pre = jax.random.normal(k1, (2, 4, 16, 16), dtype=jnp.float32)
    f8 = jax.random.normal(k2, (2, 8, 4, 4), dtype=jnp.float32)

    feat32_n, feat8_n = feature_extraction_post(f32_pre, f8, normalization=True)
    feat32_n = jax.block_until_ready(feat32_n)
    feat8_n = jax.block_until_ready(feat8_n)

    # Pure-JAX references matching the PyTorch module.
    feat32_ref = jax.nn.sigmoid(f32_pre)
    ss_tex = jnp.sum(jnp.square(feat32_ref).reshape(2, 4, -1), axis=-1) + 1e-6
    feat32_ref_n = feat32_ref / jnp.sqrt(ss_tex)[:, :, None, None]
    ss_ch = jnp.sum(jnp.square(f8), axis=1, keepdims=True) + 1e-6
    feat8_ref_n = f8 / jnp.sqrt(ss_ch)

    assert feat32_n.shape == f32_pre.shape and feat8_n.shape == f8.shape
    assert jnp.allclose(feat32_n, feat32_ref_n, rtol=1e-5, atol=1e-5)
    assert jnp.allclose(feat8_n, feat8_ref_n, rtol=1e-5, atol=1e-5)
    print("KERNEL_OK")
</pallas_src>

<mosaic_0001>
module attributes {stable_mosaic.version = 11 : i64} {
  func.func @_sigmoid_kernel(%arg0: i32, %arg1: memref<1x2048xf32, #tpu.memory_space<vmem>>, %arg2: memref<1x2048xf32, #tpu.memory_space<vmem>>) attributes {dimension_semantics = [#tpu.dimension_semantics<parallel>], iteration_bounds = array<i64: 1>, scalar_prefetch = 0 : i64, scratch_operands = 0 : i64, tpu.core_type = #tpu.core_type<tc>, window_params = [{transform_indices = @transform_0, window_bounds = array<i64: 1, 2048>}, {transform_indices = @transform_1, window_bounds = array<i64: 1, 2048>}]} {
    %c0 = arith.constant 0 : index
    %c0_0 = arith.constant 0 : index
    %0 = vector.load %arg1[%c0, %c0_0] : memref<1x2048xf32, #tpu.memory_space<vmem>>, vector<1x2048xf32>
    %1 = arith.negf %0 : vector<1x2048xf32>
    %2 = math.exp %1 : vector<1x2048xf32>
    %cst = arith.constant 1.000000e+00 : f32
    %3 = vector.broadcast %cst : f32 to vector<1x2048xf32>
    %4 = arith.addf %3, %2 : vector<1x2048xf32>
    %5 = arith.divf %3, %4 : vector<1x2048xf32>
    %c0_1 = arith.constant 0 : index
    %c0_2 = arith.constant 0 : index
    %6 = vector.load %arg2[%c0_1, %c0_2] : memref<1x2048xf32, #tpu.memory_space<vmem>>, vector<1x2048xf32>
    tpu.vector_store %arg2[%c0_1, %c0_2], %5 {strides = array<i32>} : memref<1x2048xf32, #tpu.memory_space<vmem>>, vector<1x2048xf32>,
    return
  }
  func.func @transform_0(%arg0: i32) -> (i32, i32) {
    %c0_i32 = arith.constant 0 : i32
    %c0_i32_0 = arith.constant 0 : i32
    return %arg0, %c0_i32 : i32, i32
  }
  func.func @transform_1(%arg0: i32) -> (i32, i32) {
    %c0_i32 = arith.constant 0 : i32
    %c0_i32_0 = arith.constant 0 : i32
    return %arg0, %c0_i32 : i32, i32
  }
}

</mosaic_0001>

<llo_original>
// kernel: tpu_custom_call.1
$region0: #{tpu_custom_call.1}
  #allocation0 [shape = 'u32[]', space=smem, size = 0x4, offset = 0x4, fixed_abs, tag = 'smem constant byte address 0x4 - core index']
  #allocation1 [shape = 'u32[144,128]{1,0:T(1,128)}', space=vmem, size = 0x12000, scoped, tag = 'internal scratch']
  %s0 = inlined_call_operand.hbm [shape: f32[1,2048], index: 0, kind: input, shape index: {}]
  %s1 = inlined_call_operand.hbm [shape: f32[1,2048], index: 1, kind: output, shape index: {}]
  %s2 = sld [smem:[#allocation0]]
  $region18: #{tpu_custom_call.1} parent=0
    _
  %s4 = ssub.s32 1, %s2
  %s5 = scalar_select 0, %s4, %s2
  $region1: #{tpu_custom_call.1} parent=0
    #allocation2 [shape = 'u8[8192]{0}', space=vmem, size = 0x2000, scoped, tag = 'input window, operand 0, single buffered']
    #allocation3 [shape = 's32[1]{0}', space=sflag, size = 0x4, scoped, tag = 'scoped memory for tpu_custom_call.1']
    #allocation4 [shape = 's32[1]{0}', space=sflag, size = 0x4, scoped, tag = 'scoped memory for tpu_custom_call.1']
    #allocation5 [shape = 'u8[8192]{0}', space=vmem, size = 0x2000, scoped, tag = 'output window, operand 0, single buffered']
    %6 = vsyncpa [#allocation3], 0
    %7 = vsyncpa [#allocation4], 0
    // Predicated region
    $region2: #{tpu_custom_call.1} parent=1 // pred_check
      _
    $region3: #{tpu_custom_call.1} parent=1 // pred_check_branch
      %9 = sbr.rel (0) target = $region5
    $region4: #{tpu_custom_call.1} parent=1 // pred_region
      %s11 = ssub.s32 256, 256
      %12 = vsyncadd [#allocation3], %s11
      %s14 = sshll.u32 [#allocation2], 4
      %s15 = int_to_ptr.vmem [resolvable:$true] %s14
      %17 = dma.hbm_to_vmem [thread:$0]  %s0, 256, %s15, [#allocation3]
    $region5: #{tpu_custom_call.1} parent=1 // pred_fallthru
      _
    // Predicated region
    $region6: #{tpu_custom_call.1} parent=1 // pred_check
      _
    $region7: #{tpu_custom_call.1} parent=1 // pred_check_branch
      %19 = sbr.rel (0) target = $region9
    $region8: #{tpu_custom_call.1} parent=1 // pred_region
      %20 = dma.done [#allocation3], 256
    $region9: #{tpu_custom_call.1} parent=1 // pred_fallthru
      _
    %v21 = vld [vmem:[#allocation2] sm:$0xff]
    %v22 = vld [vmem:[#allocation2 + $0x8] sm:$0xff]
    %v23 = vxor.u32 %v21, 2147483648
    %v24 = vxor.u32 %v22, 2147483648
    %v25 = vmul.f32 %v23, 1.442695
    %v26 = vpow.pop %v25
    %v27 = vmul.f32 %v24, 1.442695
    %v28 = vpow.pop %v27
    %v29 = vadd.f32 %v26, 1.0
    %v30 = vadd.f32 %v28, 1.0
    %v31 = vrcp.pop %v29
    %v32 = vmul.f32 1.0, %v31
    %v33 = vrcp.pop %v30
    %v34 = vmul.f32 1.0, %v33
    %35 = vst [vmem:[#allocation5] sm:$0xff] %v32
    %36 = vst [vmem:[#allocation5 + $0x8] sm:$0xff] %v34
    // Predicated region
    $region10: #{tpu_custom_call.1} parent=1 // pred_check
      _
    $region11: #{tpu_custom_call.1} parent=1 // pred_check_branch
      %38 = sbr.rel (0) target = $region13
    $region12: #{tpu_custom_call.1} parent=1 // pred_region
      %s40 = ssub.s32 256, 256
      %41 = vsyncadd [#allocation4], %s40
      %s43 = sshll.u32 [#allocation5], 4
      %s44 = int_to_ptr.vmem [resolvable:$true] %s43
      %46 = dma.vmem_to_hbm [thread:$0]  %s44, 256, %s1, [#allocation4]
    $region13: #{tpu_custom_call.1} parent=1 // pred_fallthru
      _
    // Predicated region
    $region14: #{tpu_custom_call.1} parent=1 // pred_check
      _
    $region15: #{tpu_custom_call.1} parent=1 // pred_check_branch
      %48 = sbr.rel (0) target = $region17
    $region16: #{tpu_custom_call.1} parent=1 // pred_region
      %49 = dma.done [#allocation4], 256
    $region17: #{tpu_custom_call.1} parent=1 // pred_fallthru
      _
    %50 = vsyncpa [#allocation3], 1
    %51 = vsyncpa [#allocation4], 1

</llo_original>
